<compile_context>
chip_gen: v5e
topology: v5e:2x2
jax: 0.10.0
libtpu: 0.0.40
codegen_flags: <defaults>
</compile_context>

<pallas_src>
import functools

import numpy as np

import jax
import jax.numpy as jnp
from jax import lax
from jax.experimental import pallas as pl
from jax.experimental.pallas import tpu as pltpu


# ----------------------------------------------------------------------------
# Fused kernel: one grid step = one lane tile (a few whole images), everything
# stays in VMEM / vregs.
# ----------------------------------------------------------------------------
def _decoder_kernel(x_ref, m_ref, w1_ref, b1_ref, wd_ref, b2_ref, w3_ref,
                    b3_ref, o_ref, *, W):
    # x_ref : [Cin, L]        bf16   (L = images_per_step * H*W, lane-dense)
    # m_ref : [8, L]          f32    rows 0/1/2 = col_ok / row_ok / both_ok
    # w1_ref: [Cp, Cin]       bf16   (BN1 scale folded, Cmid padded to Cp)
    # b1_ref: [Cp, 1]         f32
    # wd_ref: [4*Cp, 4*Cp]    bf16   (all 9 deconv taps, BN2 scale folded)
    # b2_ref: [4*Cp, 1]       f32
    # w3_ref: [4*Cout, 4*Cp]  bf16   (block-diagonal 1x1 conv, BN3 scale folded)
    # b3_ref: [4*Cout, 1]     f32
    # o_ref : [4*Cout, L]     f32    rows = (output parity plane, channel)
    cd = w1_ref.dtype

    # ---- Stage 1: 1x1 conv (+folded BN) ; bias/ReLU epilogue in f32 ---------
    y1 = jnp.dot(w1_ref[...], x_ref[...], preferred_element_type=jnp.float32)
    y1 = jnp.maximum(y1 + b1_ref[...], 0.0)                    # [Cp, L] f32

    # ---- Stage 2: ConvTranspose2d(k=3, s=2, p=1, out_pad=1) -----------------
    # Output parity decomposition needs y1 shifted by (+1 row) and/or (+1 col),
    # zero-extended at each image's far edge.  Shifts are flat-lane rolls; the
    # precomputed (grid-invariant) masks kill anything that crossed an image
    # boundary (or wrapped around the tile).
    mc, mr, mrc = m_ref[0:1, :], m_ref[1:2, :], m_ref[2:3, :]
    y_c = jnp.roll(y1, -1, axis=1) * mc                        # (i,   j+1)
    y_r = jnp.roll(y1, -W, axis=1) * mr                        # (i+1, j  )
    y_rc = jnp.roll(y1, -(W + 1), axis=1) * mrc                # (i+1, j+1)
    ystack = jnp.concatenate([y1, y_c, y_r, y_rc], axis=0).astype(cd)

    # All 9 taps folded into one deep-K MXU matmul.
    y2 = jnp.dot(wd_ref[...], ystack, preferred_element_type=jnp.float32)
    y2 = jnp.maximum(y2 + b2_ref[...], 0.0).astype(cd)         # [4*Cp, L]

    # ---- Stage 3: 1x1 conv (block-diag over parity planes) + BN + ReLU ------
    y3 = jnp.dot(w3_ref[...], y2, preferred_element_type=jnp.float32)
    o_ref[...] = jnp.maximum(y3 + b3_ref[...], 0.0)


# ----------------------------------------------------------------------------
# Parameter folding (done ONCE per parameter set, outside the per-call path).
# ----------------------------------------------------------------------------
def _bn_affine(gamma, beta, mean, var, conv_bias, eps=1e-5):
    scale = gamma / jnp.sqrt(var + eps)
    shift = beta - mean * scale + scale * conv_bias
    return scale, shift


# For output parity (0=even,1=odd) and input shift (0 or +1): which kernel tap
# contributes (k in {0,1,2}), or None.
_TAP = {(0, 0): 1, (1, 0): 2, (1, 1): 0}


def fold_decoder_params(p, *, eps=1e-5, compute_dtype=jnp.bfloat16):
    """Fold BN + conv biases into weights, pack the deconv taps, pad Cmid."""
    Cmid, Cin = p["w1"].shape[0], p["w1"].shape[1]
    Cout = p["w3"].shape[0]
    Cp = max(8, -(-Cmid // 8) * 8)            # pad Cmid up to a full sublane tile

    s1, b1 = _bn_affine(p["bn1_g"], p["bn1_b"], p["bn1_m"], p["bn1_v"], p["b1"], eps)
    s2, b2 = _bn_affine(p["bn2_g"], p["bn2_b"], p["bn2_m"], p["bn2_v"], p["b2"], eps)
    s3, b3 = _bn_affine(p["bn3_g"], p["bn3_b"], p["bn3_m"], p["bn3_v"], p["b3"], eps)

    # conv1 (1x1): fold BN1 scale into rows, zero-pad Cmid -> Cp.
    w1 = s1[:, None] * p["w1"].reshape(Cmid, Cin)
    w1 = jnp.zeros((Cp, Cin), jnp.float32).at[:Cmid].set(w1)

    # ConvTranspose2d weight [Cin=Cmid, Cout=Cmid, 3, 3]; BN2 scale on out chan.
    # Pack all taps into one [4*Cp, 4*Cp] block matrix (rows = output parity
    # plane, cols = (shift combination, input channel)).
    w2s = p["w2"] * s2[None, :, None, None]
    zero = jnp.zeros((Cp, Cp), jnp.float32)
    rows = []
    for py in (0, 1):
        for px in (0, 1):
            blocks = []
            for sr in (0, 1):
                for sc in (0, 1):
                    ky, kx = _TAP.get((py, sr)), _TAP.get((px, sc))
                    if ky is None or kx is None:
                        blocks.append(zero)
                    else:
                        blocks.append(zero.at[:Cmid, :Cmid].set(w2s[:, :, ky, kx].T))
            rows.append(jnp.concatenate(blocks, axis=1))
    wd = jnp.concatenate(rows, axis=0)                            # [4*Cp, 4*Cp]

    # conv3 (1x1) per parity plane -> block-diagonal weight, BN3 scale folded.
    w3 = s3[:, None] * p["w3"].reshape(Cout, Cmid)
    w3p = jnp.zeros((Cout, Cp), jnp.float32).at[:, :Cmid].set(w3)
    w3bd = jnp.kron(jnp.eye(4, dtype=jnp.float32), w3p)           # [4*Cout, 4*Cp]

    b1c = jnp.zeros((Cp, 1), jnp.float32).at[:Cmid, 0].set(b1)
    b2c = jnp.zeros((4 * Cp, 1), jnp.float32)
    for q in range(4):
        b2c = b2c.at[q * Cp:q * Cp + Cmid, 0].set(b2)
    b3c = jnp.tile(b3, 4).reshape(4 * Cout, 1).astype(jnp.float32)

    # NOTE: bias operands are kept separate (instead of the ones-row trick);
    # the three [C,1] broadcast adds are a micro-cost next to the matmuls.
    return {
        "w1": w1.astype(compute_dtype), "b1": b1c,
        "wd": wd.astype(compute_dtype), "b2": b2c,
        "w3": w3bd.astype(compute_dtype), "b3": b3c,
    }


# ----------------------------------------------------------------------------
# Per-call forward: reshape to lane-dense layout, one pallas_call, interleave.
# ----------------------------------------------------------------------------
def _imgs_per_step(B, N, target_lanes=2048):
    """Whole images per lane tile: big lane tiles, but >=2 grid steps for the
    two v7x TensorCores whenever B >= 2 (free on v5e/v6e)."""
    imgs = max(1, min(B, target_lanes // max(N, 1)))
    if B >= 2 and B // imgs < 2:
        imgs = max(1, B // 2)
    while B % imgs:
        imgs -= 1
    return imgs


def decoder_block_apply(folded, x):
    """x: [B, Cin, H, W] (NCHW, like PyTorch). Returns [B, Cout, 2H, 2W] f32."""
    B, Cin, H, W = x.shape
    N = H * W
    w1, b1 = folded["w1"], folded["b1"]
    wd, b2 = folded["wd"], folded["b2"]
    w3, b3 = folded["w3"], folded["b3"]
    Cp = w1.shape[0]
    Cout = w3.shape[0] // 4
    cd = w1.dtype

    imgs = _imgs_per_step(B, N)
    n_tiles = B // imgs
    L = imgs * N                                   # lanes per grid step

    # Batch folded into the lane axis: [B, Cin, H, W] -> [Cin, B*H*W] (bf16).
    xr = jnp.transpose(x, (1, 0, 2, 3)).reshape(Cin, B * N).astype(cd)

    # Grid-invariant shift-validity masks (identical for every tile because a
    # tile always holds whole images); built as a compile-time constant.
    pos = np.arange(L) % N                         # position within its image
    col_ok = (pos % W) != (W - 1)
    row_ok = pos < (N - W)
    masks = np.zeros((8, L), np.float32)
    masks[0] = col_ok
    masks[1] = row_ok
    masks[2] = col_ok & row_ok
    masks = jnp.asarray(masks)

    # Footprint per step is tiny (<1 MiB even with double buffering), so it fits
    # the default scoped VMEM on every generation including v7x's 64 MiB.
    out_planes = pl.pallas_call(
        functools.partial(_decoder_kernel, W=W),
        out_shape=jax.ShapeDtypeStruct((4 * Cout, B * N), jnp.float32),
        grid=(n_tiles,),
        in_specs=[
            pl.BlockSpec((Cin, L), lambda i: (0, i)),
            pl.BlockSpec((8, L), lambda i: (0, 0)),
            pl.BlockSpec((Cp, Cin), lambda i: (0, 0)),
            pl.BlockSpec((Cp, 1), lambda i: (0, 0)),
            pl.BlockSpec((4 * Cp, 4 * Cp), lambda i: (0, 0)),
            pl.BlockSpec((4 * Cp, 1), lambda i: (0, 0)),
            pl.BlockSpec((4 * Cout, 4 * Cp), lambda i: (0, 0)),
            pl.BlockSpec((4 * Cout, 1), lambda i: (0, 0)),
        ],
        out_specs=pl.BlockSpec((4 * Cout, L), lambda i: (0, i)),
        compiler_params=pltpu.CompilerParams(dimension_semantics=("parallel",)),
    )(xr, masks, w1, b1, wd, b2, w3, b3)

    # Interleave the 4 parity planes -> [B, Cout, 2H, 2W].  Kept in the wrapper
    # so the kernel's output stores stay unmasked/lane-dense.
    out = out_planes.reshape(2, 2, Cout, B, H, W)
    out = out.transpose(3, 2, 4, 0, 5, 1).reshape(B, Cout, 2 * H, 2 * W)
    return out


def decoder_block_forward(x, p, *, compute_dtype=jnp.bfloat16):
    """Convenience one-shot wrapper (folds params + applies)."""
    return decoder_block_apply(fold_decoder_params(p, compute_dtype=compute_dtype), x)


# ----------------------------------------------------------------------------
# Pure-JAX reference (dense formulation) for correctness self-checks.
# compute_dtype=bf16 mirrors the kernel's operand rounding (f32 accumulation);
# compute_dtype=f32 is the exact PyTorch (eval-mode) semantics.
# ----------------------------------------------------------------------------
def decoder_block_reference(x, p, *, eps=1e-5, compute_dtype=jnp.float32):
    cd = compute_dtype
    Cmid = p["w1"].shape[0]
    Cout = p["w3"].shape[0]
    s1, b1 = _bn_affine(p["bn1_g"], p["bn1_b"], p["bn1_m"], p["bn1_v"], p["b1"], eps)
    s2, b2 = _bn_affine(p["bn2_g"], p["bn2_b"], p["bn2_m"], p["bn2_v"], p["b2"], eps)
    s3, b3 = _bn_affine(p["bn3_g"], p["bn3_b"], p["bn3_m"], p["bn3_v"], p["b3"], eps)

    w1f = (s1[:, None] * p["w1"].reshape(Cmid, -1)).astype(cd)
    y1 = jnp.einsum("oc,bchw->bohw", w1f, x.astype(cd),
                    preferred_element_type=jnp.float32)
    y1 = jnp.maximum(y1 + b1[None, :, None, None], 0.0)

    # ConvTranspose2d(k=3, s=2, p=1, out_pad=1) == lhs-dilated conv with the
    # flipped, (in,out)-transposed kernel and padding (1, 2).
    w2f = (p["w2"] * s2[None, :, None, None]).astype(cd)
    w2f = jnp.transpose(w2f, (1, 0, 2, 3))[:, :, ::-1, ::-1]
    y2 = lax.conv_general_dilated(
        y1.astype(cd), w2f, window_strides=(1, 1), padding=((1, 2), (1, 2)),
        lhs_dilation=(2, 2), dimension_numbers=("NCHW", "OIHW", "NCHW"),
        preferred_element_type=jnp.float32)
    y2 = jnp.maximum(y2 + b2[None, :, None, None], 0.0)

    w3f = (s3[:, None] * p["w3"].reshape(Cout, Cmid)).astype(cd)
    y3 = jnp.einsum("oc,bchw->bohw", w3f, y2.astype(cd),
                    preferred_element_type=jnp.float32)
    return jnp.maximum(y3 + b3[None, :, None, None], 0.0)


# ----------------------------------------------------------------------------
# Parameters (PyTorch layouts) and main.
# ----------------------------------------------------------------------------
def make_params(key, in_channels, n_filters):
    Cmid = in_channels // 4
    ks = iter(jax.random.split(key, 32))

    def nrm(shape, s=0.2):
        return (s * jax.random.normal(next(ks), shape)).astype(jnp.float32)

    p = {}
    p["w1"] = nrm((Cmid, in_channels, 1, 1))     # Conv2d OIHW
    p["b1"] = nrm((Cmid,))
    p["w2"] = nrm((Cmid, Cmid, 3, 3))            # ConvTranspose2d [Cin, Cout, kh, kw]
    p["b2"] = nrm((Cmid,))
    p["w3"] = nrm((n_filters, Cmid, 1, 1))       # Conv2d OIHW
    p["b3"] = nrm((n_filters,))
    for name, c in (("bn1", Cmid), ("bn2", Cmid), ("bn3", n_filters)):
        p[f"{name}_g"] = 1.0 + nrm((c,))
        p[f"{name}_b"] = nrm((c,))
        p[f"{name}_m"] = nrm((c,))
        p[f"{name}_v"] = 1.0 + jnp.abs(nrm((c,)))
    return p


if __name__ == "__main__":
    key = jax.random.PRNGKey(0)
    kx, kp = jax.random.split(key)
    in_channels, n_filters = 16, 8
    B, H, W = 2, 16, 16

    x = jax.random.normal(kx, (B, in_channels, H, W), jnp.float32)
    params = make_params(kp, in_channels, n_filters)

    # Weight folding is hoisted out of the per-call path: done once, reused.
    folded = jax.block_until_ready(fold_decoder_params(params))

    fwd = jax.jit(decoder_block_apply)
    out = jax.block_until_ready(fwd(folded, x))

    assert out.shape == (B, n_filters, 2 * H, 2 * W), out.shape
    assert bool(jnp.all(jnp.isfinite(out)))

    # Structural check: pure-JAX reference with the same bf16 operand rounding
    # (f32 accumulation) -> should agree to ~1e-5.
    ref_bf16 = jax.block_until_ready(
        jax.jit(functools.partial(decoder_block_reference,
                                  compute_dtype=jnp.bfloat16))(x, params))
    assert bool(jnp.allclose(out, ref_bf16, atol=2e-3, rtol=2e-3)), \
        float(jnp.max(jnp.abs(out - ref_bf16)))

    # Loose check against the full-f32 module semantics (bf16 rounding only).
    ref_f32 = jax.block_until_ready(jax.jit(decoder_block_reference)(x, params))
    assert bool(jnp.allclose(out, ref_f32, atol=1e-1, rtol=1e-1)), \
        float(jnp.max(jnp.abs(out - ref_f32)))

    print("KERNEL_OK")
</pallas_src>

<mosaic_0001>
module attributes {stable_mosaic.version = 11 : i64} {
  func.func @_decoder_kernel(%arg0: i32, %arg1: memref<16x256xbf16, #tpu.memory_space<vmem>>, %arg2: memref<8x256xf32, #tpu.memory_space<vmem>>, %arg3: memref<8x16xbf16, #tpu.memory_space<vmem>>, %arg4: memref<8x1xf32, #tpu.memory_space<vmem>>, %arg5: memref<32x32xbf16, #tpu.memory_space<vmem>>, %arg6: memref<32x1xf32, #tpu.memory_space<vmem>>, %arg7: memref<32x32xbf16, #tpu.memory_space<vmem>>, %arg8: memref<32x1xf32, #tpu.memory_space<vmem>>, %arg9: memref<32x256xf32, #tpu.memory_space<vmem>>) attributes {dimension_semantics = [#tpu.dimension_semantics<parallel>], iteration_bounds = array<i64: 2>, scalar_prefetch = 0 : i64, scratch_operands = 0 : i64, tpu.core_type = #tpu.core_type<tc>, window_params = [{transform_indices = @transform_0, window_bounds = array<i64: 16, 256>}, {pipeline_mode = #tpu.pipeline_mode<synchronous>, transform_indices = @transform_1, window_bounds = array<i64: 8, 256>}, {pipeline_mode = #tpu.pipeline_mode<synchronous>, transform_indices = @transform_2, window_bounds = array<i64: 8, 16>}, {pipeline_mode = #tpu.pipeline_mode<synchronous>, transform_indices = @transform_3, window_bounds = array<i64: 8, 1>}, {pipeline_mode = #tpu.pipeline_mode<synchronous>, transform_indices = @transform_4, window_bounds = array<i64: 32, 32>}, {pipeline_mode = #tpu.pipeline_mode<synchronous>, transform_indices = @transform_5, window_bounds = array<i64: 32, 1>}, {pipeline_mode = #tpu.pipeline_mode<synchronous>, transform_indices = @transform_6, window_bounds = array<i64: 32, 32>}, {pipeline_mode = #tpu.pipeline_mode<synchronous>, transform_indices = @transform_7, window_bounds = array<i64: 32, 1>}, {transform_indices = @transform_8, window_bounds = array<i64: 32, 256>}]} {
    %c0 = arith.constant 0 : index
    %c0_0 = arith.constant 0 : index
    %0 = vector.load %arg3[%c0, %c0_0] : memref<8x16xbf16, #tpu.memory_space<vmem>>, vector<8x16xbf16>
    %c0_1 = arith.constant 0 : index
    %c0_2 = arith.constant 0 : index
    %1 = vector.load %arg1[%c0_1, %c0_2] : memref<16x256xbf16, #tpu.memory_space<vmem>>, vector<16x256xbf16>
    %cst = arith.constant dense<0.000000e+00> : vector<8x256xf32>
    %2 = tpu.matmul %0, %1, %cst {dimension_numbers = #tpu.dot_dimension_numbers<[1], [0], [0], [1], [0, 0, 1, 1], [], []>} : vector<8x16xbf16>, vector<16x256xbf16>, vector<8x256xf32> -> vector<8x256xf32>
    %c0_3 = arith.constant 0 : index
    %c0_4 = arith.constant 0 : index
    %3 = vector.load %arg4[%c0_3, %c0_4] : memref<8x1xf32, #tpu.memory_space<vmem>>, vector<8x1xf32>
    %4 = vector.broadcast %3 : vector<8x1xf32> to vector<8x256xf32>
    %5 = arith.addf %2, %4 : vector<8x256xf32>
    %cst_5 = arith.constant 0.000000e+00 : f32
    %6 = vector.broadcast %cst_5 : f32 to vector<8x256xf32>
    %7 = arith.maximumf %5, %6 : vector<8x256xf32>
    %c0_6 = arith.constant 0 : index
    %c0_7 = arith.constant 0 : index
    %8 = vector.load %arg2[%c0_6, %c0_7] : memref<8x256xf32, #tpu.memory_space<vmem>>, vector<1x256xf32>
    %c1 = arith.constant 1 : index
    %c0_8 = arith.constant 0 : index
    %9 = vector.load %arg2[%c1, %c0_8] : memref<8x256xf32, #tpu.memory_space<vmem>>, vector<1x256xf32>
    %c2 = arith.constant 2 : index
    %c0_9 = arith.constant 0 : index
    %10 = vector.load %arg2[%c2, %c0_9] : memref<8x256xf32, #tpu.memory_space<vmem>>, vector<1x256xf32>
    %11 = vector.extract_strided_slice %7 {offsets = [0, 1], sizes = [8, 255], strides = [1, 1]} : vector<8x256xf32> to vector<8x255xf32>
    %12 = vector.extract_strided_slice %7 {offsets = [0, 0], sizes = [8, 1], strides = [1, 1]} : vector<8x256xf32> to vector<8x1xf32>
    %13 = tpu.concatenate %11, %12 in 1 : vector<8x255xf32>, vector<8x1xf32> -> vector<8x256xf32>
    %14 = vector.broadcast %8 : vector<1x256xf32> to vector<8x256xf32>
    %15 = arith.mulf %13, %14 : vector<8x256xf32>
    %16 = vector.extract_strided_slice %7 {offsets = [0, 16], sizes = [8, 240], strides = [1, 1]} : vector<8x256xf32> to vector<8x240xf32>
    %17 = vector.extract_strided_slice %7 {offsets = [0, 0], sizes = [8, 16], strides = [1, 1]} : vector<8x256xf32> to vector<8x16xf32>
    %18 = tpu.concatenate %16, %17 in 1 : vector<8x240xf32>, vector<8x16xf32> -> vector<8x256xf32>
    %19 = vector.broadcast %9 : vector<1x256xf32> to vector<8x256xf32>
    %20 = arith.mulf %18, %19 : vector<8x256xf32>
    %21 = vector.extract_strided_slice %7 {offsets = [0, 17], sizes = [8, 239], strides = [1, 1]} : vector<8x256xf32> to vector<8x239xf32>
    %22 = vector.extract_strided_slice %7 {offsets = [0, 0], sizes = [8, 17], strides = [1, 1]} : vector<8x256xf32> to vector<8x17xf32>
    %23 = tpu.concatenate %21, %22 in 1 : vector<8x239xf32>, vector<8x17xf32> -> vector<8x256xf32>
    %24 = vector.broadcast %10 : vector<1x256xf32> to vector<8x256xf32>
    %25 = arith.mulf %23, %24 : vector<8x256xf32>
    %26 = tpu.concatenate %7, %15, %20, %25 in 0 : vector<8x256xf32>, vector<8x256xf32>, vector<8x256xf32>, vector<8x256xf32> -> vector<32x256xf32>
    %27 = arith.truncf %26 : vector<32x256xf32> to vector<32x256xbf16>
    %c0_10 = arith.constant 0 : index
    %c0_11 = arith.constant 0 : index
    %28 = vector.load %arg5[%c0_10, %c0_11] : memref<32x32xbf16, #tpu.memory_space<vmem>>, vector<32x32xbf16>
    %cst_12 = arith.constant dense<0.000000e+00> : vector<32x256xf32>
    %29 = tpu.matmul %28, %27, %cst_12 {dimension_numbers = #tpu.dot_dimension_numbers<[1], [0], [0], [1], [0, 0, 1, 1], [], []>} : vector<32x32xbf16>, vector<32x256xbf16>, vector<32x256xf32> -> vector<32x256xf32>
    %c0_13 = arith.constant 0 : index
    %c0_14 = arith.constant 0 : index
    %30 = vector.load %arg6[%c0_13, %c0_14] : memref<32x1xf32, #tpu.memory_space<vmem>>, vector<32x1xf32>
    %31 = vector.broadcast %30 : vector<32x1xf32> to vector<32x256xf32>
    %32 = arith.addf %29, %31 : vector<32x256xf32>
    %cst_15 = arith.constant 0.000000e+00 : f32
    %33 = vector.broadcast %cst_15 : f32 to vector<32x256xf32>
    %34 = arith.maximumf %32, %33 : vector<32x256xf32>
    %35 = arith.truncf %34 : vector<32x256xf32> to vector<32x256xbf16>
    %c0_16 = arith.constant 0 : index
    %c0_17 = arith.constant 0 : index
    %36 = vector.load %arg7[%c0_16, %c0_17] : memref<32x32xbf16, #tpu.memory_space<vmem>>, vector<32x32xbf16>
    %cst_18 = arith.constant dense<0.000000e+00> : vector<32x256xf32>
    %37 = tpu.matmul %36, %35, %cst_18 {dimension_numbers = #tpu.dot_dimension_numbers<[1], [0], [0], [1], [0, 0, 1, 1], [], []>} : vector<32x32xbf16>, vector<32x256xbf16>, vector<32x256xf32> -> vector<32x256xf32>
    %c0_19 = arith.constant 0 : index
    %c0_20 = arith.constant 0 : index
    %38 = vector.load %arg8[%c0_19, %c0_20] : memref<32x1xf32, #tpu.memory_space<vmem>>, vector<32x1xf32>
    %39 = vector.broadcast %38 : vector<32x1xf32> to vector<32x256xf32>
    %40 = arith.addf %37, %39 : vector<32x256xf32>
    %cst_21 = arith.constant 0.000000e+00 : f32
    %41 = vector.broadcast %cst_21 : f32 to vector<32x256xf32>
    %42 = arith.maximumf %40, %41 : vector<32x256xf32>
    %c0_22 = arith.constant 0 : index
    %c0_23 = arith.constant 0 : index
    %43 = vector.load %arg9[%c0_22, %c0_23] : memref<32x256xf32, #tpu.memory_space<vmem>>, vector<32x256xf32>
    tpu.vector_store %arg9[%c0_22, %c0_23], %42 {strides = array<i32>} : memref<32x256xf32, #tpu.memory_space<vmem>>, vector<32x256xf32>,
    return
  }
  func.func @transform_0(%arg0: i32) -> (i32, i32) {
    %c0_i32 = arith.constant 0 : i32
    %c0_i32_0 = arith.constant 0 : i32
    return %c0_i32, %arg0 : i32, i32
  }
  func.func @transform_1(%arg0: i32) -> (i32, i32) {
    %c0_i32 = arith.constant 0 : i32
    %c0_i32_0 = arith.constant 0 : i32
    %c0_i32_1 = arith.constant 0 : i32
    return %c0_i32, %c0_i32_0 : i32, i32
  }
  func.func @transform_2(%arg0: i32) -> (i32, i32) {
    %c0_i32 = arith.constant 0 : i32
    %c0_i32_0 = arith.constant 0 : i32
    %c0_i32_1 = arith.constant 0 : i32
    return %c0_i32, %c0_i32_0 : i32, i32
  }
  func.func @transform_3(%arg0: i32) -> (i32, i32) {
    %c0_i32 = arith.constant 0 : i32
    %c0_i32_0 = arith.constant 0 : i32
    %c0_i32_1 = arith.constant 0 : i32
    return %c0_i32, %c0_i32_0 : i32, i32
  }
  func.func @transform_4(%arg0: i32) -> (i32, i32) {
    %c0_i32 = arith.constant 0 : i32
    %c0_i32_0 = arith.constant 0 : i32
    %c0_i32_1 = arith.constant 0 : i32
    return %c0_i32, %c0_i32_0 : i32, i32
  }
  func.func @transform_5(%arg0: i32) -> (i32, i32) {
    %c0_i32 = arith.constant 0 : i32
    %c0_i32_0 = arith.constant 0 : i32
    %c0_i32_1 = arith.constant 0 : i32
    return %c0_i32, %c0_i32_0 : i32, i32
  }
  func.func @transform_6(%arg0: i32) -> (i32, i32) {
    %c0_i32 = arith.constant 0 : i32
    %c0_i32_0 = arith.constant 0 : i32
    %c0_i32_1 = arith.constant 0 : i32
    return %c0_i32, %c0_i32_0 : i32, i32
  }
  func.func @transform_7(%arg0: i32) -> (i32, i32) {
    %c0_i32 = arith.constant 0 : i32
    %c0_i32_0 = arith.constant 0 : i32
    %c0_i32_1 = arith.constant 0 : i32
    return %c0_i32, %c0_i32_0 : i32, i32
  }
  func.func @transform_8(%arg0: i32) -> (i32, i32) {
    %c0_i32 = arith.constant 0 : i32
    %c0_i32_0 = arith.constant 0 : i32
    return %c0_i32, %arg0 : i32, i32
  }
}

</mosaic_0001>

<llo_original>
// kernel: decoder_block_apply.1
$region0: #{decoder_block_apply.1}
  #allocation0 [shape = 'u32[]', space=smem, size = 0x4, offset = 0x4, fixed_abs, tag = 'smem constant byte address 0x4 - core index']
  #allocation1 [shape = 'u32[72,128]{1,0:T(1,128)}', space=vmem, size = 0x9000, scoped, tag = 'internal scratch']
  %s0 = inlined_call_operand.vmem [shape: bf16[16,512], index: 0, kind: input, shape index: {}]
  %s1 = inlined_call_operand.vmem [shape: f32[8,256], index: 1, kind: input, shape index: {}]
  %s2 = inlined_call_operand.vmem [shape: bf16[8,16], index: 2, kind: input, shape index: {}]
  %s3 = inlined_call_operand.vmem [shape: f32[8,1], index: 3, kind: input, shape index: {}]
  %s4 = inlined_call_operand.vmem [shape: bf16[32,32], index: 4, kind: input, shape index: {}]
  %s5 = inlined_call_operand.vmem [shape: f32[32,1], index: 5, kind: input, shape index: {}]
  %s6 = inlined_call_operand.vmem [shape: bf16[32,32], index: 6, kind: input, shape index: {}]
  %s7 = inlined_call_operand.vmem [shape: f32[32,1], index: 7, kind: input, shape index: {}]
  %s8 = inlined_call_operand.vmem [shape: f32[32,512], index: 8, kind: output, shape index: {}]
  %s9 = sld [smem:[#allocation0]]
  $region122: #{decoder_block_apply.1} parent=0
    _
  %s11 = ssub.s32 1, %s9
  %s12 = scalar_select 0, %s11, %s9
  $region1: #{decoder_block_apply.1} parent=0
    #allocation2 [shape = 'u8[16384]{0}', space=vmem, size = 0x4000, scoped, tag = 'input window, operand 0']
    #allocation3 [shape = 'u8[65536]{0}', space=vmem, size = 0x10000, scoped, tag = 'output window, operand 0']
    loop: start=0, step=1, limit=4
    $region2: #{decoder_block_apply.1} parent=1 // loop_pre_header
      _
    $region3: #{decoder_block_apply.1} parent=1 // loop_header
      %s14 = sphi 0, %s18
      %p15 = scmp.ge.s32.totalorder %s14, 4
      %s24 = sphi 0, %s26
      %s27 = sphi 0, %s24
      %s28 = sphi 0, %s27
      %s44 = sphi 0, %s28
      %s48 = sphi 0, %s48
      %s50 = sphi 0, %s48
      %s51 = sphi 0, %s50
      %s65 = sphi 0, %s51
      %s69 = sphi 0, %s69
      %s71 = sphi 0, %s69
      %s72 = sphi 0, %s71
      %s86 = sphi 0, %s72
      %s90 = sphi 0, %s90
      %s92 = sphi 0, %s90
      %s93 = sphi 0, %s92
      %s107 = sphi 0, %s93
      %s111 = sphi 0, %s111
      %s113 = sphi 0, %s111
      %s114 = sphi 0, %s113
      %s128 = sphi 0, %s114
      %s132 = sphi 0, %s132
      %s134 = sphi 0, %s132
      %s135 = sphi 0, %s134
      %s149 = sphi 0, %s135
      %s153 = sphi 0, %s153
      %s155 = sphi 0, %s153
      %s156 = sphi 0, %s155
      %s170 = sphi 0, %s156
      %s174 = sphi 0, %s174
      %s176 = sphi 0, %s174
      %s177 = sphi 0, %s176
      %s191 = sphi 0, %s177
      %s197 = sphi 0, %s199
      %s200 = sphi 0, %s197
      %s201 = sphi 0, %s200
      %s217 = sphi 0, %s201
    $region4: #{decoder_block_apply.1} parent=1 // loop_header_branch
      %17 = sbr.rel (%p15) target = $region8
    $region5: #{decoder_block_apply.1} parent=1 // loop_body
      %s19 = ssub.s32 %s14, 1
      %s20 = ssub.s32 %s14, 2
      %s21 = sadd.s32 %s14, 1
      %s22 = ssub.s32 %s14, %s21
      %p23 = scmp.eq.s32.totalorder %s22, 0
      %s25 = sadd.s32 %s24, 1
      %s26 = scalar_select %p23, %s24, %s25
      %p29 = pneg %p23
      %p30 = scmp.eq.s32.totalorder %s14, 1
      %p31 = por %p29, %p30
      %p32 = scmp.ne.s32.totalorder %s24, %s27
      %p33 = scmp.eq.s32.totalorder %s14, 0
      %p34 = por %p32, %p33
      %p35 = scmp.ne.s32.totalorder %s24, %s27
      %p36 = scmp.eq.s32.totalorder %s19, 1
      %p37 = por %p35, %p36
      %p38 = scmp.ne.s32.totalorder %s27, %s28
      %p39 = scmp.eq.s32.totalorder %s19, 0
      %p40 = por %p38, %p39
      %p41 = scmp.ne.s32.totalorder %s27, %s28
      %p42 = scmp.eq.s32.totalorder %s20, 1
      %p43 = por %p41, %p42
      %p45 = scmp.ne.s32.totalorder %s28, %s44
      %p46 = scmp.eq.s32.totalorder %s20, 0
      %p47 = por %p45, %p46
      %s49 = sadd.s32 %s48, 1
      %p52 = scmp.eq.s32.totalorder %s14, 1
      %p53 = scmp.ne.s32.totalorder %s48, %s50
      %p54 = scmp.eq.s32.totalorder %s14, 0
      %p55 = por %p53, %p54
      %p56 = scmp.ne.s32.totalorder %s48, %s50
      %p57 = scmp.eq.s32.totalorder %s19, 1
      %p58 = por %p56, %p57
      %p59 = scmp.ne.s32.totalorder %s50, %s51
      %p60 = scmp.eq.s32.totalorder %s19, 0
      %p61 = por %p59, %p60
      %p62 = scmp.ne.s32.totalorder %s50, %s51
      %p63 = scmp.eq.s32.totalorder %s20, 1
      %p64 = por %p62, %p63
      %p66 = scmp.ne.s32.totalorder %s51, %s65
      %p67 = scmp.eq.s32.totalorder %s20, 0
      %p68 = por %p66, %p67
      %s70 = sadd.s32 %s69, 1
      %p73 = scmp.eq.s32.totalorder %s14, 1
      %p74 = scmp.ne.s32.totalorder %s69, %s71
      %p75 = scmp.eq.s32.totalorder %s14, 0
      %p76 = por %p74, %p75
      %p77 = scmp.ne.s32.totalorder %s69, %s71
      %p78 = scmp.eq.s32.totalorder %s19, 1
      %p79 = por %p77, %p78
      %p80 = scmp.ne.s32.totalorder %s71, %s72
      %p81 = scmp.eq.s32.totalorder %s19, 0
      %p82 = por %p80, %p81
      %p83 = scmp.ne.s32.totalorder %s71, %s72
      %p84 = scmp.eq.s32.totalorder %s20, 1
      %p85 = por %p83, %p84
      %p87 = scmp.ne.s32.totalorder %s72, %s86
      %p88 = scmp.eq.s32.totalorder %s20, 0
      %p89 = por %p87, %p88
      %s91 = sadd.s32 %s90, 1
      %p94 = scmp.eq.s32.totalorder %s14, 1
      %p95 = scmp.ne.s32.totalorder %s90, %s92
      %p96 = scmp.eq.s32.totalorder %s14, 0
      %p97 = por %p95, %p96
      %p98 = scmp.ne.s32.totalorder %s90, %s92
      %p99 = scmp.eq.s32.totalorder %s19, 1
      %p100 = por %p98, %p99
      %p101 = scmp.ne.s32.totalorder %s92, %s93
      %p102 = scmp.eq.s32.totalorder %s19, 0
      %p103 = por %p101, %p102
      %p104 = scmp.ne.s32.totalorder %s92, %s93
      %p105 = scmp.eq.s32.totalorder %s20, 1
      %p106 = por %p104, %p105
      %p108 = scmp.ne.s32.totalorder %s93, %s107
      %p109 = scmp.eq.s32.totalorder %s20, 0
      %p110 = por %p108, %p109
      %s112 = sadd.s32 %s111, 1
      %p115 = scmp.eq.s32.totalorder %s14, 1
      %p116 = scmp.ne.s32.totalorder %s111, %s113
      %p117 = scmp.eq.s32.totalorder %s14, 0
      %p118 = por %p116, %p117
      %p119 = scmp.ne.s32.totalorder %s111, %s113
      %p120 = scmp.eq.s32.totalorder %s19, 1
      %p121 = por %p119, %p120
      %p122 = scmp.ne.s32.totalorder %s113, %s114
      %p123 = scmp.eq.s32.totalorder %s19, 0
      %p124 = por %p122, %p123
      %p125 = scmp.ne.s32.totalorder %s113, %s114
      %p126 = scmp.eq.s32.totalorder %s20, 1
      %p127 = por %p125, %p126
      %p129 = scmp.ne.s32.totalorder %s114, %s128
      %p130 = scmp.eq.s32.totalorder %s20, 0
      %p131 = por %p129, %p130
      %s133 = sadd.s32 %s132, 1
      %p136 = scmp.eq.s32.totalorder %s14, 1
      %p137 = scmp.ne.s32.totalorder %s132, %s134
      %p138 = scmp.eq.s32.totalorder %s14, 0
      %p139 = por %p137, %p138
      %p140 = scmp.ne.s32.totalorder %s132, %s134
      %p141 = scmp.eq.s32.totalorder %s19, 1
      %p142 = por %p140, %p141
      %p143 = scmp.ne.s32.totalorder %s134, %s135
      %p144 = scmp.eq.s32.totalorder %s19, 0
      %p145 = por %p143, %p144
      %p146 = scmp.ne.s32.totalorder %s134, %s135
      %p147 = scmp.eq.s32.totalorder %s20, 1
      %p148 = por %p146, %p147
      %p150 = scmp.ne.s32.totalorder %s135, %s149
      %p151 = scmp.eq.s32.totalorder %s20, 0
      %p152 = por %p150, %p151
      %s154 = sadd.s32 %s153, 1
      %p157 = scmp.eq.s32.totalorder %s14, 1
      %p158 = scmp.ne.s32.totalorder %s153, %s155
      %p159 = scmp.eq.s32.totalorder %s14, 0
      %p160 = por %p158, %p159
      %p161 = scmp.ne.s32.totalorder %s153, %s155
      %p162 = scmp.eq.s32.totalorder %s19, 1
      %p163 = por %p161, %p162
      %p164 = scmp.ne.s32.totalorder %s155, %s156
      %p165 = scmp.eq.s32.totalorder %s19, 0
      %p166 = por %p164, %p165
      %p167 = scmp.ne.s32.totalorder %s155, %s156
      %p168 = scmp.eq.s32.totalorder %s20, 1
      %p169 = por %p167, %p168
      %p171 = scmp.ne.s32.totalorder %s156, %s170
      %p172 = scmp.eq.s32.totalorder %s20, 0
      %p173 = por %p171, %p172
      %s175 = sadd.s32 %s174, 1
      %p178 = scmp.eq.s32.totalorder %s14, 1
      %p179 = scmp.ne.s32.totalorder %s174, %s176
      %p180 = scmp.eq.s32.totalorder %s14, 0
      %p181 = por %p179, %p180
      %p182 = scmp.ne.s32.totalorder %s174, %s176
      %p183 = scmp.eq.s32.totalorder %s19, 1
      %p184 = por %p182, %p183
      %p185 = scmp.ne.s32.totalorder %s176, %s177
      %p186 = scmp.eq.s32.totalorder %s19, 0
      %p187 = por %p185, %p186
      %p188 = scmp.ne.s32.totalorder %s176, %s177
      %p189 = scmp.eq.s32.totalorder %s20, 1
      %p190 = por %p188, %p189
      %p192 = scmp.ne.s32.totalorder %s177, %s191
      %p193 = scmp.eq.s32.totalorder %s20, 0
      %p194 = por %p192, %p193
      %s195 = ssub.s32 %s14, %s21
      %p196 = scmp.eq.s32.totalorder %s195, 0
      %s198 = sadd.s32 %s197, 1
      %s199 = scalar_select %p196, %s197, %s198
      %p202 = pneg %p196
      %p203 = scmp.eq.s32.totalorder %s14, 1
      %p204 = por %p202, %p203
      %p205 = scmp.ne.s32.totalorder %s197, %s200
      %p206 = scmp.eq.s32.totalorder %s14, 0
      %p207 = por %p205, %p206
      %p208 = scmp.ne.s32.totalorder %s197, %s200
      %p209 = scmp.eq.s32.totalorder %s19, 1
      %p210 = por %p208, %p209
      %p211 = scmp.ne.s32.totalorder %s200, %s201
      %p212 = scmp.eq.s32.totalorder %s19, 0
      %p213 = por %p211, %p212
      %p214 = scmp.ne.s32.totalorder %s200, %s201
      %p215 = scmp.eq.s32.totalorder %s20, 1
      %p216 = por %p214, %p215
      %p218 = scmp.ne.s32.totalorder %s201, %s217
      %p219 = scmp.eq.s32.totalorder %s20, 0
      %p220 = por %p218, %p219
      %p221 = scmp.le.s32.totalorder 1, %s14
      %p222 = scmp.lt.s32.totalorder %s14, 3
      %p223 = pnand %p221, %p222
      %p224 = pneg %p223
      // Predicated region
      $region9: #{decoder_block_apply.1} parent=5 // pred_check
        _
      $region10: #{decoder_block_apply.1} parent=5 // pred_check_branch
        %226 = sbr.rel (%p223) target = $region12
      $region11: #{decoder_block_apply.1} parent=5 // pred_region
        %s227 = ssub.s32 %s14, 1
        // Predicated region
        $region13: #{decoder_block_apply.1} parent=11 // pred_check
          %p228 = pneg %p61
        $region14: #{decoder_block_apply.1} parent=11 // pred_check_branch
          %230 = sbr.rel (%p228) target = $region16
        $region15: #{decoder_block_apply.1} parent=11 // pred_region
          _
        $region16: #{decoder_block_apply.1} parent=11 // pred_fallthru
          _
        // Predicated region
        $region17: #{decoder_block_apply.1} parent=11 // pred_check
          %p231 = pneg %p82
        $region18: #{decoder_block_apply.1} parent=11 // pred_check_branch
          %233 = sbr.rel (%p231) target = $region20
        $region19: #{decoder_block_apply.1} parent=11 // pred_region
          _
        $region20: #{decoder_block_apply.1} parent=11 // pred_fallthru
          _
        // Predicated region
        $region21: #{decoder_block_apply.1} parent=11 // pred_check
          %p234 = pneg %p103
        $region22: #{decoder_block_apply.1} parent=11 // pred_check_branch
          %236 = sbr.rel (%p234) target = $region24
        $region23: #{decoder_block_apply.1} parent=11 // pred_region
          _
        $region24: #{decoder_block_apply.1} parent=11 // pred_fallthru
          _
        // Predicated region
        $region25: #{decoder_block_apply.1} parent=11 // pred_check
          %p237 = pneg %p124
        $region26: #{decoder_block_apply.1} parent=11 // pred_check_branch
          %239 = sbr.rel (%p237) target = $region28
        $region27: #{decoder_block_apply.1} parent=11 // pred_region
          _
        $region28: #{decoder_block_apply.1} parent=11 // pred_fallthru
          _
        // Predicated region
        $region29: #{decoder_block_apply.1} parent=11 // pred_check
          %p240 = pneg %p145
        $region30: #{decoder_block_apply.1} parent=11 // pred_check_branch
          %242 = sbr.rel (%p240) target = $region32
        $region31: #{decoder_block_apply.1} parent=11 // pred_region
          _
        $region32: #{decoder_block_apply.1} parent=11 // pred_fallthru
          _
        // Predicated region
        $region33: #{decoder_block_apply.1} parent=11 // pred_check
          %p243 = pneg %p166
        $region34: #{decoder_block_apply.1} parent=11 // pred_check_branch
          %245 = sbr.rel (%p243) target = $region36
        $region35: #{decoder_block_apply.1} parent=11 // pred_region
          _
        $region36: #{decoder_block_apply.1} parent=11 // pred_fallthru
          _
        // Predicated region
        $region37: #{decoder_block_apply.1} parent=11 // pred_check
          %p246 = pneg %p187
        $region38: #{decoder_block_apply.1} parent=11 // pred_check_branch
          %248 = sbr.rel (%p246) target = $region40
        $region39: #{decoder_block_apply.1} parent=11 // pred_region
          _
        $region40: #{decoder_block_apply.1} parent=11 // pred_fallthru
          _
      $region12: #{decoder_block_apply.1} parent=5 // pred_fallthru
        _
      %p249 = scmp.lt.s32.totalorder %s14, 2
      // Predicated region
      $region41: #{decoder_block_apply.1} parent=5 // pred_check
        %p250 = pneg %p249
      $region42: #{decoder_block_apply.1} parent=5 // pred_check_branch
        %252 = sbr.rel (%p250) target = $region44
      $region43: #{decoder_block_apply.1} parent=5 // pred_region
        // Predicated region
        $region45: #{decoder_block_apply.1} parent=43 // pred_check
          %p253 = pneg %p34
        $region46: #{decoder_block_apply.1} parent=43 // pred_check_branch
          %255 = sbr.rel (%p253) target = $region48
        $region47: #{decoder_block_apply.1} parent=43 // pred_region
          %s256 = sand.u32 %s24, 1
          %s257 = sand.u32 %s24, 1
          %s258 = smul.addr %s257, 16
          %s259 = scalar_lea.vmem [#allocation2], %s258
          %s260 = smul.u32 2, %s14
          %s261 = smul.addr %s260, 4
          %s262 = scalar_lea.vmem %s0, %s261
          // Predicated region
          $region49: #{decoder_block_apply.1} parent=47 // pred_check
            _
          $region50: #{decoder_block_apply.1} parent=47 // pred_check_branch
            %264 = sbr.rel (0) target = $region52
          $region51: #{decoder_block_apply.1} parent=47 // pred_region
            // Predicated region
            $region53: #{decoder_block_apply.1} parent=51 // pred_check
              _
            $region54: #{decoder_block_apply.1} parent=51 // pred_check_branch
              %266 = sbr.rel (0) target = $region56
            $region55: #{decoder_block_apply.1} parent=51 // pred_region
              // Predicated region
              $region68: #{decoder_block_apply.1} parent=55 // pred_check
                _
              $region69: #{decoder_block_apply.1} parent=55 // pred_check_branch
                %284 = sbr.rel (0) target = $region71
              $region70: #{decoder_block_apply.1} parent=55 // pred_region
                loop: start=0, step=1, limit=1
                $region72: #{decoder_block_apply.1} parent=70 // loop_pre_header
                  _
                $region73: #{decoder_block_apply.1} parent=70 // loop_header
                  %s286 = sphi 0, %s290
                  %p287 = scmp.ge.s32.totalorder %s286, 1
                  %s291 = sphi %s262, %s262
                  %s292 = sphi %s259, %s259
                $region74: #{decoder_block_apply.1} parent=70 // loop_header_branch
                  %289 = sbr.rel (%p287) target = $region78
                $region75: #{decoder_block_apply.1} parent=70 // loop_body
                  %v293 = vld [vmem:[%s291] sm:$0xff]
                  %294 = vst [vmem:[%s292] sm:$0xff] %v293
                  %v295 = vld [vmem:[%s291 + $0x10] sm:$0xff]
                  %296 = vst [vmem:[%s292 + $0x8] sm:$0xff] %v295
                $region76: #{decoder_block_apply.1} parent=70 // loop_footer
                  %s290 = sadd.s32 1, %s286
                $region77: #{decoder_block_apply.1} parent=70 // loop_footer_branch
                  %285 = sbr.rel target = $region73
                $region78: #{decoder_block_apply.1} parent=70 // loop_exit
                  _
              $region71: #{decoder_block_apply.1} parent=55 // pred_fallthru
                _
              // Predicated region
              $region79: #{decoder_block_apply.1} parent=55 // pred_check
                _
              $region80: #{decoder_block_apply.1} parent=55 // pred_check_branch
                %298 = sbr.rel target = $region82
              $region81: #{decoder_block_apply.1} parent=55 // pred_region
                _
              $region82: #{decoder_block_apply.1} parent=55 // pred_fallthru
                _
            $region56: #{decoder_block_apply.1} parent=51 // pred_fallthru
              _
            // Predicated region
            $region57: #{decoder_block_apply.1} parent=51 // pred_check
              _
            $region58: #{decoder_block_apply.1} parent=51 // pred_check_branch
              %268 = sbr.rel target = $region60
            $region59: #{decoder_block_apply.1} parent=51 // pred_region
              %s270 = ssub.s32 256, 1
              loop: start=0, step=1, limit=1
              $region61: #{decoder_block_apply.1} parent=59 // loop_pre_header
                _
              $region62: #{decoder_block_apply.1} parent=59 // loop_header
                %s272 = sphi 0, %s276
                %p273 = scmp.ge.s32.totalorder %s272, 1
                %s277 = sphi %s262, %s262
                %s278 = sphi %s259, %s259
              $region63: #{decoder_block_apply.1} parent=59 // loop_header_branch
                %275 = sbr.rel (%p273) target = $region67
              $region64: #{decoder_block_apply.1} parent=59 // loop_body
                %v279 = vld [vmem:[%s277] sm:%s270]
                %280 = vst [vmem:[%s278] sm:%s270] %v279
                %v281 = vld [vmem:[%s277 + $0x10] sm:%s270]
                %282 = vst [vmem:[%s278 + $0x8] sm:%s270] %v281
              $region65: #{decoder_block_apply.1} parent=59 // loop_footer
                %s276 = sadd.s32 1, %s272
              $region66: #{decoder_block_apply.1} parent=59 // loop_footer_branch
                %271 = sbr.rel target = $region62
              $region67: #{decoder_block_apply.1} parent=59 // loop_exit
                _
            $region60: #{decoder_block_apply.1} parent=51 // pred_fallthru
              _
          $region52: #{decoder_block_apply.1} parent=47 // pred_fallthru
            _
          %299 = vnop
        $region48: #{decoder_block_apply.1} parent=43 // pred_fallthru
          _
      $region44: #{decoder_block_apply.1} parent=5 // pred_fallthru
        _
      %p300 = scmp.le.s32.totalorder 1, %s14
      %p301 = scmp.lt.s32.totalorder %s14, 3
      %p302 = pnand %p300, %p301
      %p303 = pneg %p302
      // Predicated region
      $region83: #{decoder_block_apply.1} parent=5 // pred_check
        _
      $region84: #{decoder_block_apply.1} parent=5 // pred_check_branch
        %305 = sbr.rel (%p302) target = $region86
      $region85: #{decoder_block_apply.1} parent=5 // pred_region
        %s306 = ssub.s32 %s14, 1
        %s307 = sand.u32 %s27, 1
        %s308 = sand.u32 %s27, 1
        %s309 = smul.addr %s308, 16
        %s310 = scalar_lea.vmem [#allocation2], %s309
        // Predicated region
        $region87: #{decoder_block_apply.1} parent=85 // pred_check
          %p311 = pneg %p40
        $region88: #{decoder_block_apply.1} parent=85 // pred_check_branch
          %313 = sbr.rel (%p311) target = $region90
        $region89: #{decoder_block_apply.1} parent=85 // pred_region
          _
        $region90: #{decoder_block_apply.1} parent=85 // pred_fallthru
          _
        %s314 = sand.u32 %s27, 1
        %s315 = sand.u32 %s27, 1
        %s316 = smul.addr %s315, 16
        %s317 = scalar_lea.vmem [#allocation2], %s316
        %p318 = pneg %p40
        %p319 = pneg %p37
        %p320 = pneg %p61
        %p321 = pneg %p58
        %p322 = pneg %p82
        %p323 = pneg %p79
        %p324 = pneg %p103
        %p325 = pneg %p100
        %p326 = pneg %p124
        %p327 = pneg %p121
        %p328 = pneg %p145
        %p329 = pneg %p142
        %p330 = pneg %p166
        %p331 = pneg %p163
        %p332 = pneg %p187
        %p333 = pneg %p184
        %p334 = pneg %p213
        %p335 = pneg %p210
        %s336 = sand.u32 %s200, 1
        %s337 = sand.u32 %s200, 1
        %s338 = smul.addr %s337, 64
        %s339 = scalar_lea.vmem [#allocation3], %s338
        %s340 = smul.u32 2, %s19
        %s341 = smul.u32 2, %s19
        %v343 = vld [vmem:[%s2] sm:$0xf]
        %v344 = vld [vmem:[%s310] sm:$0xff]
        %v345 = vld [vmem:[%s310 + $0x8] sm:$0xff]
        %v346 = vld [vmem:[%s3] sm:$0xff]
        %348 = vset.pattern.permute.xlu0 0
        %349 = vperm.xlu0 %348, %v346
        %v350 = vpop.permute.xlu0 %349
        %v354 = vunpack.c.l.b16 %v344
        %v355 = vunpack.c.h.b16 %v344
        %v356 = vunpack.c.l.b16 %v345
        %v357 = vunpack.c.h.b16 %v345
        %v358 = vpack.c.b16 %v356, %v354
        %v359 = vpack.c.b16 %v357, %v355
        %vm362 = vcmask 130048
        %v364 = vsel %vm362, %v343, 0
        %366 = vmatpush.bf16.msra.mxu0 0
        %367 = vmatpush.bf16.msra.mxu0 0
        %368 = vmatpush.bf16.msra.mxu0 0
        %369 = vmatpush.bf16.msra.mxu0 0
        %370 = vmatpush.bf16.msra.mxu0 0
        %371 = vmatpush.bf16.msra.mxu0 0
        %372 = vmatpush.bf16.msra.mxu0 0
        %373 = vmatpush.bf16.msra.mxu0 %v358
        %374 = vmatmul.bf16.gmra.mxu0 %v364
        %v375 = vpop.f32.mrf.mxu0
        %v376 = vadd.f32 %v350, %v375
        %v377 = vpop.f32.mrf.mxu0
        %378 = vdwg.mxu0
        %379 = vmatpush.bf16.msra.mxu0 0
        %380 = vmatpush.bf16.msra.mxu0 0
        %381 = vmatpush.bf16.msra.mxu0 0
        %382 = vmatpush.bf16.msra.mxu0 0
        %383 = vmatpush.bf16.msra.mxu0 0
        %384 = vmatpush.bf16.msra.mxu0 0
        %385 = vmatpush.bf16.msra.mxu0 0
        %386 = vmatpush.bf16.msra.mxu0 %v359
        %387 = vmatmul.bf16.gmra.mxu0 %v364
        %v388 = vpop.f32.mrf.mxu0
        %v389 = vadd.f32 %v350, %v388
        %v390 = vpop.f32.mrf.mxu0
        %391 = vdwg.mxu0
        %v392 = vmax.f32 %v376, 0.0
        %v393 = vmax.f32 %v389, 0.0
        %v394 = vld [vmem:[%s1] ss:$8 sm:$0x3]
        %s395 = scalar_lea.vmem %s1, 1
        %v396 = vld [vmem:[%s395] ss:$8 sm:$0x3]
        %s397 = scalar_lea.vmem %s1, 2
        %v398 = vld [vmem:[%s397] ss:$8 sm:$0x3]
        %401 = vrot.lane.b32.xlu0 %v392, 127
        %v402 = vpop.permute.xlu0 %401
        %403 = vrot.lane.b32.xlu0 %v393, 127
        %v404 = vpop.permute.xlu0 %403
        %vm405 = vcmask 1039360
        %v406 = vsel %vm405, %v402, %v404
        %v410 = vsel %vm405, %v404, %v402
        %v412 = vperm.slane %v394, 0
        %v413 = vperm.slane %v394, 1
        %v416 = vmul.f32 %v406, %v412
        %v417 = vmul.f32 %v410, %v413
        %418 = vrot.lane.b32.xlu0 %v392, 112
        %v419 = vpop.permute.xlu0 %418
        %420 = vrot.lane.b32.xlu0 %v393, 112
        %v421 = vpop.permute.xlu0 %420
        %vm422 = vcmask 916480
        %v423 = vsel %vm422, %v419, %v421
        %v427 = vsel %vm422, %v421, %v419
        %v429 = vperm.slane %v396, 0
        %v430 = vperm.slane %v396, 1
        %v433 = vmul.f32 %v423, %v429
        %v434 = vmul.f32 %v427, %v430
        %435 = vrot.lane.b32.xlu0 %v392, 111
        %v436 = vpop.permute.xlu0 %435
        %437 = vrot.lane.b32.xlu0 %v393, 111
        %v438 = vpop.permute.xlu0 %437
        %vm439 = vcmask 908288
        %v440 = vsel %vm439, %v436, %v438
        %v444 = vsel %vm439, %v438, %v436
        %v446 = vperm.slane %v398, 0
        %v447 = vperm.slane %v398, 1
        %v450 = vmul.f32 %v440, %v446
        %v451 = vmul.f32 %v444, %v447
        %v452 = vpack.c.bf16 %v416, %v392
        %v453 = vpack.c.bf16 %v417, %v393
        %v454 = vpack.c.bf16 %v450, %v433
        %v455 = vpack.c.bf16 %v451, %v434
        %v456 = vld [vmem:[%s4] sm:$0xf]
        %v457 = vld [vmem:[%s4 + $0x4] sm:$0xf]
        %v458 = vld [vmem:[%s4 + $0x8] sm:$0xf]
        %v459 = vld [vmem:[%s4 + $0xc] sm:$0xf]
        %v460 = vld [vmem:[%s5] sm:$0xff]
        %v461 = vld [vmem:[%s5 + $0x8] sm:$0xff]
        %v462 = vld [vmem:[%s5 + $0x10] sm:$0xff]
        %v463 = vld [vmem:[%s5 + $0x18] sm:$0xff]
        %465 = vset.pattern.permute.xlu0 0
        %466 = vperm.xlu0 %465, %v460
        %v467 = vpop.permute.xlu0 %466
        %470 = vset.pattern.permute.xlu0 0
        %471 = vperm.xlu0 %470, %v461
        %v472 = vpop.permute.xlu0 %471
        %475 = vset.pattern.permute.xlu0 0
        %476 = vperm.xlu0 %475, %v462
        %v477 = vpop.permute.xlu0 %476
        %480 = vset.pattern.permute.xlu0 0
        %481 = vperm.xlu0 %480, %v463
        %v482 = vpop.permute.xlu0 %481
        %v488 = vunpack.c.l.b16 %v456
        %v489 = vunpack.c.l.b16 %v457
        %v490 = vunpack.c.l.b16 %v458
        %v491 = vunpack.c.l.b16 %v459
        %v492 = vpack.c.b16 %v489, %v488
        %v493 = vpack.c.b16 %v491, %v490
        %vm494 = vcmask 261120
        %v496 = vsel %vm494, %v492, 0
        %v499 = vsel %vm494, %v493, 0
        %501 = vmatpush.bf16.msra.mxu0 0
        %502 = vmatpush.bf16.msra.mxu0 0
        %503 = vmatpush.bf16.msra.mxu0 0
        %504 = vmatpush.bf16.msra.mxu0 0
        %505 = vmatpush.bf16.msra.mxu0 0
        %506 = vmatpush.bf16.msra.mxu0 0
        %507 = vmatpush.bf16.msra.mxu0 %v454
        %508 = vmatpush.bf16.msra.mxu0 %v452
        %509 = vmatmul.bf16.gmra.mxu0 %v496
        %v510 = vpop.f32.mrf.mxu0
        %v511 = vadd.f32 %v467, %v510
        %v512 = vpop.f32.mrf.mxu0
        %v513 = vadd.f32 %v472, %v512
        %514 = vmatmul.bf16.gmra.mxu0 %v499
        %v515 = vpop.f32.mrf.mxu0
        %v516 = vadd.f32 %v477, %v515
        %v517 = vpop.f32.mrf.mxu0
        %v518 = vadd.f32 %v482, %v517
        %519 = vdwg.mxu0
        %520 = vmatpush.bf16.msra.mxu0 0
        %521 = vmatpush.bf16.msra.mxu0 0
        %522 = vmatpush.bf16.msra.mxu0 0
        %523 = vmatpush.bf16.msra.mxu0 0
        %524 = vmatpush.bf16.msra.mxu0 0
        %525 = vmatpush.bf16.msra.mxu0 0
        %526 = vmatpush.bf16.msra.mxu0 %v455
        %527 = vmatpush.bf16.msra.mxu0 %v453
        %528 = vmatmul.bf16.gmra.mxu0 %v496
        %v529 = vpop.f32.mrf.mxu0
        %v530 = vadd.f32 %v467, %v529
        %v531 = vpop.f32.mrf.mxu0
        %v532 = vadd.f32 %v472, %v531
        %533 = vmatmul.bf16.gmra.mxu0 %v499
        %v534 = vpop.f32.mrf.mxu0
        %v535 = vadd.f32 %v477, %v534
        %v536 = vpop.f32.mrf.mxu0
        %v537 = vadd.f32 %v482, %v536
        %538 = vdwg.mxu0
        %v539 = vmax.f32 %v511, 0.0
        %v540 = vmax.f32 %v530, 0.0
        %v541 = vmax.f32 %v513, 0.0
        %v542 = vmax.f32 %v532, 0.0
        %v543 = vmax.f32 %v516, 0.0
        %v544 = vmax.f32 %v535, 0.0
        %v545 = vmax.f32 %v518, 0.0
        %v546 = vmax.f32 %v537, 0.0
        %v547 = vpack.c.bf16 %v541, %v539
        %v548 = vpack.c.bf16 %v542, %v540
        %v549 = vpack.c.bf16 %v545, %v543
        %v550 = vpack.c.bf16 %v546, %v544
        %v551 = vld [vmem:[%s6] sm:$0xf]
        %v552 = vld [vmem:[%s6 + $0x4] sm:$0xf]
        %v553 = vld [vmem:[%s6 + $0x8] sm:$0xf]
        %v554 = vld [vmem:[%s6 + $0xc] sm:$0xf]
        %v555 = vld [vmem:[%s7] sm:$0xff]
        %v556 = vld [vmem:[%s7 + $0x8] sm:$0xff]
        %v557 = vld [vmem:[%s7 + $0x10] sm:$0xff]
        %v558 = vld [vmem:[%s7 + $0x18] sm:$0xff]
        %560 = vset.pattern.permute.xlu0 0
        %561 = vperm.xlu0 %560, %v555
        %v562 = vpop.permute.xlu0 %561
        %565 = vset.pattern.permute.xlu0 0
        %566 = vperm.xlu0 %565, %v556
        %v567 = vpop.permute.xlu0 %566
        %570 = vset.pattern.permute.xlu0 0
        %571 = vperm.xlu0 %570, %v557
        %v572 = vpop.permute.xlu0 %571
        %575 = vset.pattern.permute.xlu0 0
        %576 = vperm.xlu0 %575, %v558
        %v577 = vpop.permute.xlu0 %576
        %v583 = vunpack.c.l.b16 %v551
        %v584 = vunpack.c.l.b16 %v552
        %v585 = vunpack.c.l.b16 %v553
        %v586 = vunpack.c.l.b16 %v554
        %v587 = vpack.c.b16 %v584, %v583
        %v588 = vpack.c.b16 %v586, %v585
        %v590 = vsel %vm494, %v587, 0
        %v593 = vsel %vm494, %v588, 0
        %595 = vmatpush.bf16.msra.mxu0 0
        %596 = vmatpush.bf16.msra.mxu0 0
        %597 = vmatpush.bf16.msra.mxu0 0
        %598 = vmatpush.bf16.msra.mxu0 0
        %599 = vmatpush.bf16.msra.mxu0 0
        %600 = vmatpush.bf16.msra.mxu0 0
        %601 = vmatpush.bf16.msra.mxu0 %v549
        %602 = vmatpush.bf16.msra.mxu0 %v547
        %603 = vmatmul.bf16.gmra.mxu0 %v590
        %v604 = vpop.f32.mrf.mxu0
        %v605 = vadd.f32 %v562, %v604
        %v606 = vpop.f32.mrf.mxu0
        %v607 = vadd.f32 %v567, %v606
        %608 = vmatmul.bf16.gmra.mxu0 %v593
        %v609 = vpop.f32.mrf.mxu0
        %v610 = vadd.f32 %v572, %v609
        %v611 = vpop.f32.mrf.mxu0
        %v612 = vadd.f32 %v577, %v611
        %613 = vdwg.mxu0
        %614 = vmatpush.bf16.msra.mxu0 0
        %615 = vmatpush.bf16.msra.mxu0 0
        %616 = vmatpush.bf16.msra.mxu0 0
        %617 = vmatpush.bf16.msra.mxu0 0
        %618 = vmatpush.bf16.msra.mxu0 0
        %619 = vmatpush.bf16.msra.mxu0 0
        %620 = vmatpush.bf16.msra.mxu0 %v550
        %621 = vmatpush.bf16.msra.mxu0 %v548
        %622 = vmatmul.bf16.gmra.mxu0 %v590
        %v623 = vpop.f32.mrf.mxu0
        %v624 = vadd.f32 %v562, %v623
        %v625 = vpop.f32.mrf.mxu0
        %v626 = vadd.f32 %v567, %v625
        %627 = vmatmul.bf16.gmra.mxu0 %v593
        %v628 = vpop.f32.mrf.mxu0
        %v629 = vadd.f32 %v572, %v628
        %v630 = vpop.f32.mrf.mxu0
        %v631 = vadd.f32 %v577, %v630
        %632 = vdwg.mxu0
        %v633 = vmax.f32 %v605, 0.0
        %v634 = vmax.f32 %v624, 0.0
        %v635 = vmax.f32 %v607, 0.0
        %v636 = vmax.f32 %v626, 0.0
        %v637 = vmax.f32 %v610, 0.0
        %v638 = vmax.f32 %v629, 0.0
        %v639 = vmax.f32 %v612, 0.0
        %v640 = vmax.f32 %v631, 0.0
        %641 = vst [vmem:[%s339] sm:$0xff] %v633
        %642 = vst [vmem:[%s339 + $0x8] sm:$0xff] %v634
        %643 = vst [vmem:[%s339 + $0x10] sm:$0xff] %v635
        %644 = vst [vmem:[%s339 + $0x18] sm:$0xff] %v636
        %645 = vst [vmem:[%s339 + $0x20] sm:$0xff] %v637
        %646 = vst [vmem:[%s339 + $0x28] sm:$0xff] %v638
        %647 = vst [vmem:[%s339 + $0x30] sm:$0xff] %v639
        %648 = vst [vmem:[%s339 + $0x38] sm:$0xff] %v640
        %s649 = sand.u32 %s200, 1
        %s650 = sand.u32 %s200, 1
        %s651 = smul.addr %s650, 64
        %s652 = scalar_lea.vmem [#allocation3], %s651
        // Predicated region
        $region91: #{decoder_block_apply.1} parent=85 // pred_check
          %p653 = pneg %p210
        $region92: #{decoder_block_apply.1} parent=85 // pred_check_branch
          %655 = sbr.rel (%p653) target = $region94
        $region93: #{decoder_block_apply.1} parent=85 // pred_region
          %s656 = smul.u32 2, %s19
          %s657 = smul.addr %s656, 8
          %s658 = scalar_lea.vmem %s8, %s657
          // Predicated region
          $region95: #{decoder_block_apply.1} parent=93 // pred_check
            _
          $region96: #{decoder_block_apply.1} parent=93 // pred_check_branch
            %660 = sbr.rel (0) target = $region98
          $region97: #{decoder_block_apply.1} parent=93 // pred_region
            // Predicated region
            $region99: #{decoder_block_apply.1} parent=97 // pred_check
              _
            $region100: #{decoder_block_apply.1} parent=97 // pred_check_branch
              %662 = sbr.rel (0) target = $region102
            $region101: #{decoder_block_apply.1} parent=97 // pred_region
              loop: start=0, step=1, limit=1
              $region103: #{decoder_block_apply.1} parent=101 // loop_pre_header
                _
              $region104: #{decoder_block_apply.1} parent=101 // loop_header
                %s664 = sphi 0, %s668
                %p665 = scmp.ge.s32.totalorder %s664, 1
                %s669 = sphi %s652, %s652
                %s670 = sphi %s658, %s658
              $region105: #{decoder_block_apply.1} parent=101 // loop_header_branch
                %667 = sbr.rel (%p665) target = $region109
              $region106: #{decoder_block_apply.1} parent=101 // loop_body
                %v671 = vld [vmem:[%s669] sm:$0xff]
                %672 = vst [vmem:[%s670] sm:$0xff] %v671
                %v673 = vld [vmem:[%s669 + $0x8] sm:$0xff]
                %674 = vst [vmem:[%s670 + $0x8] sm:$0xff] %v673
                %v675 = vld [vmem:[%s669 + $0x10] sm:$0xff]
                %676 = vst [vmem:[%s670 + $0x20] sm:$0xff] %v675
                %v677 = vld [vmem:[%s669 + $0x18] sm:$0xff]
                %678 = vst [vmem:[%s670 + $0x28] sm:$0xff] %v677
                %v679 = vld [vmem:[%s669 + $0x20] sm:$0xff]
                %680 = vst [vmem:[%s670 + $0x40] sm:$0xff] %v679
                %v681 = vld [vmem:[%s669 + $0x28] sm:$0xff]
                %682 = vst [vmem:[%s670 + $0x48] sm:$0xff] %v681
                %v683 = vld [vmem:[%s669 + $0x30] sm:$0xff]
                %684 = vst [vmem:[%s670 + $0x60] sm:$0xff] %v683
                %v685 = vld [vmem:[%s669 + $0x38] sm:$0xff]
                %686 = vst [vmem:[%s670 + $0x68] sm:$0xff] %v685
              $region107: #{decoder_block_apply.1} parent=101 // loop_footer
                %s668 = sadd.s32 1, %s664
              $region108: #{decoder_block_apply.1} parent=101 // loop_footer_branch
                %663 = sbr.rel target = $region104
              $region109: #{decoder_block_apply.1} parent=101 // loop_exit
                _
            $region102: #{decoder_block_apply.1} parent=97 // pred_fallthru
              _
            // Predicated region
            $region110: #{decoder_block_apply.1} parent=97 // pred_check
              _
            $region111: #{decoder_block_apply.1} parent=97 // pred_check_branch
              %688 = sbr.rel target = $region113
            $region112: #{decoder_block_apply.1} parent=97 // pred_region
              _
            $region113: #{decoder_block_apply.1} parent=97 // pred_fallthru
              _
          $region98: #{decoder_block_apply.1} parent=93 // pred_fallthru
            _
          %689 = vnop
        $region94: #{decoder_block_apply.1} parent=85 // pred_fallthru
          _
      $region86: #{decoder_block_apply.1} parent=5 // pred_fallthru
        _
      %p690 = scmp.le.s32.totalorder 2, %s14
      // Predicated region
      $region114: #{decoder_block_apply.1} parent=5 // pred_check
        %p691 = pneg %p690
      $region115: #{decoder_block_apply.1} parent=5 // pred_check_branch
        %693 = sbr.rel (%p691) target = $region117
      $region116: #{decoder_block_apply.1} parent=5 // pred_region
        %s694 = ssub.s32 %s14, 2
        // Predicated region
        $region118: #{decoder_block_apply.1} parent=116 // pred_check
          %p695 = pneg %p216
        $region119: #{decoder_block_apply.1} parent=116 // pred_check_branch
          %697 = sbr.rel (%p695) target = $region121
        $region120: #{decoder_block_apply.1} parent=116 // pred_region
          %s698 = sand.u32 %s201, 1
          %s699 = sand.u32 %s201, 1
          %s700 = smul.addr %s699, 64
          %s701 = scalar_lea.vmem [#allocation3], %s700
        $region121: #{decoder_block_apply.1} parent=116 // pred_fallthru
          _
      $region117: #{decoder_block_apply.1} parent=5 // pred_fallthru
        _
    $region6: #{decoder_block_apply.1} parent=1 // loop_footer
      %s18 = sadd.s32 1, %s14
    $region7: #{decoder_block_apply.1} parent=1 // loop_footer_branch
      %13 = sbr.rel target = $region3
    $region8: #{decoder_block_apply.1} parent=1 // loop_exit
      _

</llo_original>
